<compile_context>
chip_gen: v6e
topology: v6e:2x2x1
jax: 0.10.0
libtpu: 0.0.40
codegen_flags: <defaults>
</compile_context>

<pallas_src>
import functools

import jax
import jax.numpy as jnp
from jax.experimental import pallas as pl
from jax.experimental.pallas import tpu as pltpu


def _round_up(n, m):
    return ((n + m - 1) // m) * m


def _resblock_kernel(x_ref, wt_ref, b_ref, o_ref, *, nlayers):
    # x_ref : [TB, D]       activation tile (batch-tiled grid axis)
    # wt_ref: [L, D, D]     PRE-TRANSPOSED weights: wt[l] = W[l].T (resident block)
    # b_ref : [L, D]        biases, f32 (resident block)
    # o_ref : [TB, D]
    x_inp = x_ref[...].astype(jnp.float32)     # keep residual in f32
    b_all = b_ref[...]                         # (L, D), loaded once
    mxu_dtype = wt_ref.dtype                   # f32 or bf16 (wrapper-chosen)

    h = x_inp
    for l in range(nlayers):                   # static unroll; nlayers is compile-time
        h = jnp.dot(h.astype(mxu_dtype), wt_ref[l],
                    preferred_element_type=jnp.float32)
        h = h + b_all[l][None, :].astype(jnp.float32)
        if l < nlayers - 1:
            h = jnp.maximum(h, 0.0)            # intermediate nonlinearity (nlin='relu')
        # TODO(synk): Dropout omitted (dropout=0 / inference mode); training-mode
        # dropout would need pltpu.prng_seed + pltpu.prng_random_bits.

    # residual add + output nonlinearity (ReLU, per the module's dangling-else)
    o_ref[...] = jnp.maximum(h + x_inp, 0.0).astype(o_ref.dtype)


def resblock_forward(x, w_stack, b_stack, *, block_b=256,
                     compute_dtype=jnp.float32):
    """x: [B, D] f32, w_stack: [L, D, D] (PyTorch out,in layout), b_stack: [L, D]."""
    B, D = x.shape
    L = w_stack.shape[0]

    # Hoist the transpose out of the kernel: done once by XLA, MXU consumes directly.
    w_t = jnp.swapaxes(w_stack, 1, 2).astype(compute_dtype)   # wt[l] = W[l].T
    b = b_stack.astype(jnp.float32)                           # bias stays f32

    # Batch tile (multiple of 8 sublanes); pad B up to a whole number of tiles.
    tb = min(int(block_b), _round_up(B, 8))
    tb = _round_up(tb, 8)
    B_pad = _round_up(B, tb)
    x_in = jnp.pad(x, ((0, B_pad - B), (0, 0))) if B_pad != B else x

    # VMEM budget: double-buffered activation tiles (in+out) + resident
    # weights/bias (+slack). Clamp to the v7x 64 MiB physical ceiling.
    itemsize_x = x.dtype.itemsize
    itemsize_w = jnp.dtype(compute_dtype).itemsize
    vmem_bytes = (2 * 2 * tb * D * itemsize_x
                  + 2 * (L * D * D * itemsize_w + L * D * 4)
                  + (2 << 20))
    vmem_limit = int(min(max(vmem_bytes, 8 << 20), 64 << 20))

    cost = pl.CostEstimate(
        flops=2 * B_pad * D * D * L + 4 * B_pad * D * L,
        transcendentals=0,
        bytes_accessed=int(B_pad * D * itemsize_x * 2            # x in + out
                           + L * D * D * itemsize_w              # weights
                           + L * D * 4),                         # bias
    )

    kernel = functools.partial(_resblock_kernel, nlayers=L)
    out = pl.pallas_call(
        kernel,
        out_shape=jax.ShapeDtypeStruct((B_pad, D), x.dtype),
        grid_spec=pltpu.PrefetchScalarGridSpec(
            num_scalar_prefetch=0,
            grid=(B_pad // tb,),
            in_specs=[
                pl.BlockSpec((tb, D), lambda i: (i, 0)),        # activations: batch-tiled
                pl.BlockSpec((L, D, D), lambda i: (0, 0, 0)),   # weights: resident
                pl.BlockSpec((L, D), lambda i: (0, 0)),         # bias: resident, lane-dense
            ],
            out_specs=pl.BlockSpec((tb, D), lambda i: (i, 0)),
        ),
        compiler_params=pltpu.CompilerParams(
            dimension_semantics=("parallel",),   # shard batch tiles across TCs
            vmem_limit_bytes=vmem_limit,
        ),
        cost_estimate=cost,
    )(x_in, w_t, b)
    return out[:B]


def resblock_reference(x, w_stack, b_stack):
    """Pure-JAX reference mirroring the PyTorch forward (f32)."""
    L = w_stack.shape[0]
    x_inp = x
    h = x
    for l in range(L):
        h = h @ w_stack[l].T + b_stack[l]
        if l < L - 1:
            h = jnp.maximum(h, 0.0)
    return jnp.maximum(h + x_inp, 0.0)


if __name__ == "__main__":
    # Module config: ResBlock(dim=128, nlayers=3, nlin='relu', dropout=0)
    dim = 128
    nlayers = 3
    batch = 256    # 2 batch tiles at block_b=128 -> exercises the parallel grid

    key = jax.random.PRNGKey(0)
    kx, kw, kb = jax.random.split(key, 3)

    x = jax.random.normal(kx, (batch, dim), dtype=jnp.float32)
    # Deterministic synthetic parameters (PyTorch Linear-style scale 1/sqrt(dim)).
    bound = float(dim) ** -0.5
    w_stack = jax.random.uniform(
        kw, (nlayers, dim, dim), dtype=jnp.float32, minval=-bound, maxval=bound
    )
    b_stack = jax.random.uniform(
        kb, (nlayers, dim), dtype=jnp.float32, minval=-bound, maxval=bound
    )

    y_ref = resblock_reference(x, w_stack, b_stack)

    # f32 MXU-input path (exact-ish).
    y = jax.block_until_ready(resblock_forward(x, w_stack, b_stack, block_b=128))
    assert y.shape == (batch, dim)
    assert jnp.allclose(y, y_ref, atol=1e-4, rtol=1e-4), "f32 mismatch vs reference"

    # bf16 MXU-input path (v6e/v7x throughput path; f32 accumulate + f32 residual).
    y_bf16 = jax.block_until_ready(
        resblock_forward(x, w_stack, b_stack, block_b=128,
                         compute_dtype=jnp.bfloat16))
    assert jnp.allclose(y_bf16, y_ref, atol=5e-2, rtol=5e-2), "bf16 mismatch vs reference"

    print("KERNEL_OK")
</pallas_src>

<mosaic_0001>
module attributes {stable_mosaic.version = 11 : i64} {
  func.func @_resblock_kernel(%arg0: i32, %arg1: memref<128x128xf32, #tpu.memory_space<vmem>>, %arg2: memref<3x128x128xf32, #tpu.memory_space<vmem>>, %arg3: memref<3x128xf32, #tpu.memory_space<vmem>>, %arg4: memref<128x128xf32, #tpu.memory_space<vmem>>) attributes {dimension_semantics = [#tpu.dimension_semantics<parallel>], iteration_bounds = array<i64: 2>, scalar_prefetch = 0 : i64, scratch_operands = 0 : i64, tpu.core_type = #tpu.core_type<tc>, window_params = [{transform_indices = @transform_0, window_bounds = array<i64: 128, 128>}, {pipeline_mode = #tpu.pipeline_mode<synchronous>, transform_indices = @transform_1, window_bounds = array<i64: 3, 128, 128>}, {pipeline_mode = #tpu.pipeline_mode<synchronous>, transform_indices = @transform_2, window_bounds = array<i64: 3, 128>}, {transform_indices = @transform_3, window_bounds = array<i64: 128, 128>}]} {
    %c0 = arith.constant 0 : index
    %c0_0 = arith.constant 0 : index
    %0 = vector.load %arg1[%c0, %c0_0] : memref<128x128xf32, #tpu.memory_space<vmem>>, vector<128x128xf32>
    %c0_1 = arith.constant 0 : index
    %c0_2 = arith.constant 0 : index
    %1 = vector.load %arg3[%c0_1, %c0_2] : memref<3x128xf32, #tpu.memory_space<vmem>>, vector<3x128xf32>
    %c0_3 = arith.constant 0 : index
    %c0_4 = arith.constant 0 : index
    %c0_5 = arith.constant 0 : index
    %2 = vector.load %arg2[%c0_3, %c0_4, %c0_5] : memref<3x128x128xf32, #tpu.memory_space<vmem>>, vector<1x128x128xf32>
    %3 = vector.shape_cast %2 : vector<1x128x128xf32> to vector<128x128xf32>
    %cst = arith.constant dense<0.000000e+00> : vector<128x128xf32>
    %4 = tpu.matmul %0, %3, %cst {dimension_numbers = #tpu.dot_dimension_numbers<[1], [0], [0], [1], [0, 0, 1, 1], [], []>} : vector<128x128xf32>, vector<128x128xf32>, vector<128x128xf32> -> vector<128x128xf32>
    %5 = vector.extract_strided_slice %1 {offsets = [0, 0], sizes = [1, 128], strides = [1, 1]} : vector<3x128xf32> to vector<1x128xf32>
    %6 = vector.shape_cast %5 : vector<1x128xf32> to vector<128xf32>
    %7 = vector.shape_cast %6 : vector<128xf32> to vector<1x128xf32>
    %8 = vector.broadcast %7 : vector<1x128xf32> to vector<128x128xf32>
    %9 = arith.addf %4, %8 : vector<128x128xf32>
    %cst_6 = arith.constant 0.000000e+00 : f32
    %10 = vector.broadcast %cst_6 : f32 to vector<128x128xf32>
    %11 = arith.maximumf %9, %10 : vector<128x128xf32>
    %c1 = arith.constant 1 : index
    %c0_7 = arith.constant 0 : index
    %c0_8 = arith.constant 0 : index
    %12 = vector.load %arg2[%c1, %c0_7, %c0_8] : memref<3x128x128xf32, #tpu.memory_space<vmem>>, vector<1x128x128xf32>
    %13 = vector.shape_cast %12 : vector<1x128x128xf32> to vector<128x128xf32>
    %cst_9 = arith.constant dense<0.000000e+00> : vector<128x128xf32>
    %14 = tpu.matmul %11, %13, %cst_9 {dimension_numbers = #tpu.dot_dimension_numbers<[1], [0], [0], [1], [0, 0, 1, 1], [], []>} : vector<128x128xf32>, vector<128x128xf32>, vector<128x128xf32> -> vector<128x128xf32>
    %15 = vector.extract_strided_slice %1 {offsets = [1, 0], sizes = [1, 128], strides = [1, 1]} : vector<3x128xf32> to vector<1x128xf32>
    %16 = vector.shape_cast %15 : vector<1x128xf32> to vector<128xf32>
    %17 = vector.shape_cast %16 : vector<128xf32> to vector<1x128xf32>
    %18 = vector.broadcast %17 : vector<1x128xf32> to vector<128x128xf32>
    %19 = arith.addf %14, %18 : vector<128x128xf32>
    %cst_10 = arith.constant 0.000000e+00 : f32
    %20 = vector.broadcast %cst_10 : f32 to vector<128x128xf32>
    %21 = arith.maximumf %19, %20 : vector<128x128xf32>
    %c2 = arith.constant 2 : index
    %c0_11 = arith.constant 0 : index
    %c0_12 = arith.constant 0 : index
    %22 = vector.load %arg2[%c2, %c0_11, %c0_12] : memref<3x128x128xf32, #tpu.memory_space<vmem>>, vector<1x128x128xf32>
    %23 = vector.shape_cast %22 : vector<1x128x128xf32> to vector<128x128xf32>
    %cst_13 = arith.constant dense<0.000000e+00> : vector<128x128xf32>
    %24 = tpu.matmul %21, %23, %cst_13 {dimension_numbers = #tpu.dot_dimension_numbers<[1], [0], [0], [1], [0, 0, 1, 1], [], []>} : vector<128x128xf32>, vector<128x128xf32>, vector<128x128xf32> -> vector<128x128xf32>
    %25 = vector.extract_strided_slice %1 {offsets = [2, 0], sizes = [1, 128], strides = [1, 1]} : vector<3x128xf32> to vector<1x128xf32>
    %26 = vector.shape_cast %25 : vector<1x128xf32> to vector<128xf32>
    %27 = vector.shape_cast %26 : vector<128xf32> to vector<1x128xf32>
    %28 = vector.broadcast %27 : vector<1x128xf32> to vector<128x128xf32>
    %29 = arith.addf %24, %28 : vector<128x128xf32>
    %30 = arith.addf %29, %0 : vector<128x128xf32>
    %cst_14 = arith.constant 0.000000e+00 : f32
    %31 = vector.broadcast %cst_14 : f32 to vector<128x128xf32>
    %32 = arith.maximumf %30, %31 : vector<128x128xf32>
    %c0_15 = arith.constant 0 : index
    %c0_16 = arith.constant 0 : index
    %33 = vector.load %arg4[%c0_15, %c0_16] : memref<128x128xf32, #tpu.memory_space<vmem>>, vector<128x128xf32>
    tpu.vector_store %arg4[%c0_15, %c0_16], %32 {strides = array<i32>} : memref<128x128xf32, #tpu.memory_space<vmem>>, vector<128x128xf32>,
    return
  }
  func.func @transform_0(%arg0: i32) -> (i32, i32) {
    %c0_i32 = arith.constant 0 : i32
    %c0_i32_0 = arith.constant 0 : i32
    return %arg0, %c0_i32 : i32, i32
  }
  func.func @transform_1(%arg0: i32) -> (i32, i32, i32) {
    %c0_i32 = arith.constant 0 : i32
    %c0_i32_0 = arith.constant 0 : i32
    %c0_i32_1 = arith.constant 0 : i32
    %c0_i32_2 = arith.constant 0 : i32
    return %c0_i32, %c0_i32_0, %c0_i32_1 : i32, i32, i32
  }
  func.func @transform_2(%arg0: i32) -> (i32, i32) {
    %c0_i32 = arith.constant 0 : i32
    %c0_i32_0 = arith.constant 0 : i32
    %c0_i32_1 = arith.constant 0 : i32
    return %c0_i32, %c0_i32_0 : i32, i32
  }
  func.func @transform_3(%arg0: i32) -> (i32, i32) {
    %c0_i32 = arith.constant 0 : i32
    %c0_i32_0 = arith.constant 0 : i32
    return %arg0, %c0_i32 : i32, i32
  }
}

</mosaic_0001>

<llo_original>
// kernel: tpu_custom_call.1
$region0: #{tpu_custom_call.1}
  #allocation0 [shape = 'u32[]', space=smem, size = 0x4, offset = 0x4, fixed_abs, tag = 'smem constant byte address 0x4 - core index']
  #allocation1 [shape = 'u32[144,128]{1,0:T(1,128)}', space=vmem, size = 0x12000, scoped, tag = 'internal scratch']
  %s0 = inlined_call_operand.hbm [shape: f32[256,128], index: 0, kind: input, shape index: {}]
  %s1 = inlined_call_operand.hbm [shape: f32[3,128,128], index: 1, kind: input, shape index: {}]
  %s2 = inlined_call_operand.hbm [shape: f32[3,128], index: 2, kind: input, shape index: {}]
  %s3 = inlined_call_operand.hbm [shape: f32[256,128], index: 3, kind: output, shape index: {}]
  %s4 = sld [smem:[#allocation0]]
  $region57: #{tpu_custom_call.1} parent=0
    _
  %s6 = ssub.s32 1, %s4
  %s7 = scalar_select 0, %s6, %s4
  $region1: #{tpu_custom_call.1} parent=0
    #allocation2 [shape = 'u8[131072]{0}', space=vmem, size = 0x20000, scoped, tag = 'input window, operand 0']
    #allocation3 [shape = 's32[2]{0}', space=sflag, size = 0x8, scoped, tag = 'scoped memory for tpu_custom_call.1']
    #allocation4 [shape = 's32[2]{0}', space=sflag, size = 0x8, scoped, tag = 'scoped memory for tpu_custom_call.1']
    #allocation5 [shape = 'u8[196608]{0}', space=vmem, size = 0x30000, scoped, tag = 'input window, operand 1, single buffered']
    #allocation6 [shape = 's32[1]{0}', space=sflag, size = 0x4, scoped, tag = 'scoped memory for tpu_custom_call.1']
    #allocation7 [shape = 'u8[2048]{0}', space=vmem, size = 0x800, scoped, tag = 'input window, operand 2, single buffered']
    #allocation8 [shape = 'u8[131072]{0}', space=vmem, size = 0x20000, scoped, tag = 'output window, operand 0']
    %8 = vsyncpa [#allocation3], 0
    %s9 = scalar_lea.sflag [#allocation3], 1
    %10 = vsyncpa %s9, 0
    %11 = vsyncpa [#allocation6], 0
    %12 = vsyncpa [#allocation4], 0
    %s13 = scalar_lea.sflag [#allocation4], 1
    %14 = vsyncpa %s13, 0
    loop: start=0, step=1, limit=4
    $region2: #{tpu_custom_call.1} parent=1 // loop_pre_header
      _
    $region3: #{tpu_custom_call.1} parent=1 // loop_header
      %s16 = sphi 0, %s20
      %p17 = scmp.ge.s32.totalorder %s16, 4
      %s26 = sphi 0, %s28
      %s29 = sphi 0, %s26
      %s30 = sphi 0, %s29
      %s46 = sphi 0, %s30
      %s50 = sphi 0, %s50
      %s52 = sphi 0, %s50
      %s53 = sphi 0, %s52
      %s67 = sphi 0, %s53
      %s71 = sphi 0, %s71
      %s73 = sphi 0, %s71
      %s74 = sphi 0, %s73
      %s88 = sphi 0, %s74
      %s94 = sphi 0, %s96
      %s97 = sphi 0, %s94
      %s98 = sphi 0, %s97
      %s114 = sphi 0, %s98
    $region4: #{tpu_custom_call.1} parent=1 // loop_header_branch
      %19 = sbr.rel (%p17) target = $region8
    $region5: #{tpu_custom_call.1} parent=1 // loop_body
      %s21 = ssub.s32 %s16, 1
      %s22 = ssub.s32 %s16, 2
      %s23 = sadd.s32 %s16, 1
      %s24 = ssub.s32 %s16, %s23
      %p25 = scmp.eq.s32.totalorder %s24, 0
      %s27 = sadd.s32 %s26, 1
      %s28 = scalar_select %p25, %s26, %s27
      %p31 = pneg %p25
      %p32 = scmp.eq.s32.totalorder %s16, 1
      %p33 = por %p31, %p32
      %p34 = scmp.ne.s32.totalorder %s26, %s29
      %p35 = scmp.eq.s32.totalorder %s16, 0
      %p36 = por %p34, %p35
      %p37 = scmp.ne.s32.totalorder %s26, %s29
      %p38 = scmp.eq.s32.totalorder %s21, 1
      %p39 = por %p37, %p38
      %p40 = scmp.ne.s32.totalorder %s29, %s30
      %p41 = scmp.eq.s32.totalorder %s21, 0
      %p42 = por %p40, %p41
      %p43 = scmp.ne.s32.totalorder %s29, %s30
      %p44 = scmp.eq.s32.totalorder %s22, 1
      %p45 = por %p43, %p44
      %p47 = scmp.ne.s32.totalorder %s30, %s46
      %p48 = scmp.eq.s32.totalorder %s22, 0
      %p49 = por %p47, %p48
      %s51 = sadd.s32 %s50, 1
      %p54 = scmp.eq.s32.totalorder %s16, 1
      %p55 = scmp.ne.s32.totalorder %s50, %s52
      %p56 = scmp.eq.s32.totalorder %s16, 0
      %p57 = por %p55, %p56
      %p58 = scmp.ne.s32.totalorder %s50, %s52
      %p59 = scmp.eq.s32.totalorder %s21, 1
      %p60 = por %p58, %p59
      %p61 = scmp.ne.s32.totalorder %s52, %s53
      %p62 = scmp.eq.s32.totalorder %s21, 0
      %p63 = por %p61, %p62
      %p64 = scmp.ne.s32.totalorder %s52, %s53
      %p65 = scmp.eq.s32.totalorder %s22, 1
      %p66 = por %p64, %p65
      %p68 = scmp.ne.s32.totalorder %s53, %s67
      %p69 = scmp.eq.s32.totalorder %s22, 0
      %p70 = por %p68, %p69
      %s72 = sadd.s32 %s71, 1
      %p75 = scmp.eq.s32.totalorder %s16, 1
      %p76 = scmp.ne.s32.totalorder %s71, %s73
      %p77 = scmp.eq.s32.totalorder %s16, 0
      %p78 = por %p76, %p77
      %p79 = scmp.ne.s32.totalorder %s71, %s73
      %p80 = scmp.eq.s32.totalorder %s21, 1
      %p81 = por %p79, %p80
      %p82 = scmp.ne.s32.totalorder %s73, %s74
      %p83 = scmp.eq.s32.totalorder %s21, 0
      %p84 = por %p82, %p83
      %p85 = scmp.ne.s32.totalorder %s73, %s74
      %p86 = scmp.eq.s32.totalorder %s22, 1
      %p87 = por %p85, %p86
      %p89 = scmp.ne.s32.totalorder %s74, %s88
      %p90 = scmp.eq.s32.totalorder %s22, 0
      %p91 = por %p89, %p90
      %s92 = ssub.s32 %s16, %s23
      %p93 = scmp.eq.s32.totalorder %s92, 0
      %s95 = sadd.s32 %s94, 1
      %s96 = scalar_select %p93, %s94, %s95
      %p99 = pneg %p93
      %p100 = scmp.eq.s32.totalorder %s16, 1
      %p101 = por %p99, %p100
      %p102 = scmp.ne.s32.totalorder %s94, %s97
      %p103 = scmp.eq.s32.totalorder %s16, 0
      %p104 = por %p102, %p103
      %p105 = scmp.ne.s32.totalorder %s94, %s97
      %p106 = scmp.eq.s32.totalorder %s21, 1
      %p107 = por %p105, %p106
      %p108 = scmp.ne.s32.totalorder %s97, %s98
      %p109 = scmp.eq.s32.totalorder %s21, 0
      %p110 = por %p108, %p109
      %p111 = scmp.ne.s32.totalorder %s97, %s98
      %p112 = scmp.eq.s32.totalorder %s22, 1
      %p113 = por %p111, %p112
      %p115 = scmp.ne.s32.totalorder %s98, %s114
      %p116 = scmp.eq.s32.totalorder %s22, 0
      %p117 = por %p115, %p116
      %p118 = scmp.le.s32.totalorder 1, %s16
      %p119 = scmp.lt.s32.totalorder %s16, 3
      %p120 = pnand %p118, %p119
      %p121 = pneg %p120
      // Predicated region
      $region9: #{tpu_custom_call.1} parent=5 // pred_check
        _
      $region10: #{tpu_custom_call.1} parent=5 // pred_check_branch
        %123 = sbr.rel (%p120) target = $region12
      $region11: #{tpu_custom_call.1} parent=5 // pred_region
        %s124 = ssub.s32 %s16, 1
        // Predicated region
        $region13: #{tpu_custom_call.1} parent=11 // pred_check
          %p125 = pneg %p63
        $region14: #{tpu_custom_call.1} parent=11 // pred_check_branch
          %127 = sbr.rel (%p125) target = $region16
        $region15: #{tpu_custom_call.1} parent=11 // pred_region
          %s129 = ssub.s32 6144, 6144
          %130 = vsyncadd [#allocation6], %s129
          %s131 = sshll.u32 [#allocation5], 4
          %s132 = int_to_ptr.vmem [resolvable:$true] %s131
          %137 = dma.hbm_to_vmem [thread:$0]  %s1, 6144, %s132, [#allocation6], 128, 128, 8
        $region16: #{tpu_custom_call.1} parent=11 // pred_fallthru
          _
        // Predicated region
        $region17: #{tpu_custom_call.1} parent=11 // pred_check
          %p138 = pneg %p84
        $region18: #{tpu_custom_call.1} parent=11 // pred_check_branch
          %140 = sbr.rel (%p138) target = $region20
        $region19: #{tpu_custom_call.1} parent=11 // pred_region
          %s142 = ssub.s32 64, 64
          %143 = vsyncadd [#allocation6], %s142
          %s145 = sshll.u32 [#allocation7], 4
          %s146 = int_to_ptr.vmem [resolvable:$true] %s145
          %148 = dma.hbm_to_vmem [thread:$0]  %s2, 64, %s146, [#allocation6]
        $region20: #{tpu_custom_call.1} parent=11 // pred_fallthru
          _
      $region12: #{tpu_custom_call.1} parent=5 // pred_fallthru
        _
      %p149 = scmp.lt.s32.totalorder %s16, 2
      // Predicated region
      $region21: #{tpu_custom_call.1} parent=5 // pred_check
        %p150 = pneg %p149
      $region22: #{tpu_custom_call.1} parent=5 // pred_check_branch
        %152 = sbr.rel (%p150) target = $region24
      $region23: #{tpu_custom_call.1} parent=5 // pred_region
        // Predicated region
        $region25: #{tpu_custom_call.1} parent=23 // pred_check
          %p153 = pneg %p36
        $region26: #{tpu_custom_call.1} parent=23 // pred_check_branch
          %155 = sbr.rel (%p153) target = $region28
        $region27: #{tpu_custom_call.1} parent=23 // pred_region
          %s156 = sand.u32 %s26, 1
          %s157 = scalar_lea.sflag [#allocation3], %s156
          %s158 = sand.u32 %s26, 1
          %s159 = smul.addr %s158, 128
          %s160 = scalar_lea.vmem [#allocation2], %s159
          %s161 = smul.u32 16, %s16
          %s163 = ssub.s32 2048, 2048
          %164 = vsyncadd %s157, %s163
          %s165 = smul.addr %s161, 128
          %s166 = scalar_lea.hbm %s0, %s165
          %s167 = sshll.u32 %s160, 4
          %s168 = int_to_ptr.vmem [resolvable:$true] %s167
          %173 = dma.hbm_to_vmem [thread:$0]  %s166, 2048, %s168, %s157, 128, 128, 8
        $region28: #{tpu_custom_call.1} parent=23 // pred_fallthru
          _
      $region24: #{tpu_custom_call.1} parent=5 // pred_fallthru
        _
      %p174 = scmp.le.s32.totalorder 1, %s16
      %p175 = scmp.lt.s32.totalorder %s16, 3
      %p176 = pnand %p174, %p175
      %p177 = pneg %p176
      // Predicated region
      $region29: #{tpu_custom_call.1} parent=5 // pred_check
        _
      $region30: #{tpu_custom_call.1} parent=5 // pred_check_branch
        %179 = sbr.rel (%p176) target = $region32
      $region31: #{tpu_custom_call.1} parent=5 // pred_region
        %s180 = ssub.s32 %s16, 1
        %s181 = sand.u32 %s29, 1
        %s182 = scalar_lea.sflag [#allocation3], %s181
        %s183 = sand.u32 %s29, 1
        %s184 = smul.addr %s183, 128
        %s185 = scalar_lea.vmem [#allocation2], %s184
        // Predicated region
        $region33: #{tpu_custom_call.1} parent=31 // pred_check
          %p186 = pneg %p42
        $region34: #{tpu_custom_call.1} parent=31 // pred_check_branch
          %188 = sbr.rel (%p186) target = $region36
        $region35: #{tpu_custom_call.1} parent=31 // pred_region
          %189 = dma.done %s182, 2048
        $region36: #{tpu_custom_call.1} parent=31 // pred_fallthru
          _
        // Predicated region
        $region37: #{tpu_custom_call.1} parent=31 // pred_check
          %p190 = pneg %p63
        $region38: #{tpu_custom_call.1} parent=31 // pred_check_branch
          %192 = sbr.rel (%p190) target = $region40
        $region39: #{tpu_custom_call.1} parent=31 // pred_region
          %193 = dma.done [#allocation6], 6144
        $region40: #{tpu_custom_call.1} parent=31 // pred_fallthru
          _
        // Predicated region
        $region41: #{tpu_custom_call.1} parent=31 // pred_check
          %p194 = pneg %p84
        $region42: #{tpu_custom_call.1} parent=31 // pred_check_branch
          %196 = sbr.rel (%p194) target = $region44
        $region43: #{tpu_custom_call.1} parent=31 // pred_region
          %197 = dma.done [#allocation6], 64
        $region44: #{tpu_custom_call.1} parent=31 // pred_fallthru
          _
        %s198 = sand.u32 %s29, 1
        %s199 = scalar_lea.sflag [#allocation3], %s198
        %s200 = sand.u32 %s29, 1
        %s201 = smul.addr %s200, 128
        %s202 = scalar_lea.vmem [#allocation2], %s201
        %p203 = pneg %p42
        %p204 = pneg %p39
        %p205 = pneg %p63
        %p206 = pneg %p60
        %p207 = pneg %p84
        %p208 = pneg %p81
        %p209 = pneg %p110
        %p210 = pneg %p107
        %s211 = sand.u32 %s97, 1
        %s212 = scalar_lea.sflag [#allocation4], %s211
        %s213 = sand.u32 %s97, 1
        %s214 = smul.addr %s213, 128
        %s215 = scalar_lea.vmem [#allocation8], %s214
        %s216 = smul.u32 16, %s21
        %s217 = smul.u32 16, %s21
        %v218 = vld [vmem:[%s185] sm:$0xff]
        %v219 = vld [vmem:[%s185 + $0x8] sm:$0xff]
        %v220 = vld [vmem:[%s185 + $0x10] sm:$0xff]
        %v221 = vld [vmem:[%s185 + $0x18] sm:$0xff]
        %v222 = vld [vmem:[%s185 + $0x20] sm:$0xff]
        %v223 = vld [vmem:[%s185 + $0x28] sm:$0xff]
        %v224 = vld [vmem:[%s185 + $0x30] sm:$0xff]
        %v225 = vld [vmem:[%s185 + $0x38] sm:$0xff]
        %v226 = vld [vmem:[%s185 + $0x40] sm:$0xff]
        %v227 = vld [vmem:[%s185 + $0x48] sm:$0xff]
        %v228 = vld [vmem:[%s185 + $0x50] sm:$0xff]
        %v229 = vld [vmem:[%s185 + $0x58] sm:$0xff]
        %v230 = vld [vmem:[%s185 + $0x60] sm:$0xff]
        %v231 = vld [vmem:[%s185 + $0x68] sm:$0xff]
        %v232 = vld [vmem:[%s185 + $0x70] sm:$0xff]
        %v233 = vld [vmem:[%s185 + $0x78] sm:$0xff]
        %v234 = vld [vmem:[#allocation7] sm:$0x7]
        %v235 = vld [vmem:[#allocation5] sm:$0xff]
        %v236 = vld [vmem:[#allocation5 + $0x8] sm:$0xff]
        %v237 = vld [vmem:[#allocation5 + $0x10] sm:$0xff]
        %v238 = vld [vmem:[#allocation5 + $0x18] sm:$0xff]
        %v239 = vld [vmem:[#allocation5 + $0x20] sm:$0xff]
        %v240 = vld [vmem:[#allocation5 + $0x28] sm:$0xff]
        %v241 = vld [vmem:[#allocation5 + $0x30] sm:$0xff]
        %v242 = vld [vmem:[#allocation5 + $0x38] sm:$0xff]
        %v243 = vld [vmem:[#allocation5 + $0x40] sm:$0xff]
        %v244 = vld [vmem:[#allocation5 + $0x48] sm:$0xff]
        %v245 = vld [vmem:[#allocation5 + $0x50] sm:$0xff]
        %v246 = vld [vmem:[#allocation5 + $0x58] sm:$0xff]
        %v247 = vld [vmem:[#allocation5 + $0x60] sm:$0xff]
        %v248 = vld [vmem:[#allocation5 + $0x68] sm:$0xff]
        %v249 = vld [vmem:[#allocation5 + $0x70] sm:$0xff]
        %v250 = vld [vmem:[#allocation5 + $0x78] sm:$0xff]
        %v251 = vlaneseq
        %v252 = vshrl.u32 %v251, 7
        %v253 = vsub.s32 0, %v252
        %v254 = vrot.slane %v234, %v253
        %255 = vmatprep.subr.mxu0 0.0
        %256 = vmatpush1.msra.mxu0 %v250
        %257 = vmatprep.subr.mxu0 0.0
        %258 = vmatpush1.msra.mxu0 %v249
        %259 = vmatprep.subr.mxu0 0.0
        %260 = vmatpush1.msra.mxu0 %v248
        %261 = vmatprep.subr.mxu0 0.0
        %262 = vmatpush1.msra.mxu0 %v247
        %263 = vmatprep.subr.mxu0 0.0
        %264 = vmatpush1.msra.mxu0 %v246
        %265 = vmatprep.subr.mxu0 0.0
        %266 = vmatpush1.msra.mxu0 %v245
        %267 = vmatprep.subr.mxu0 0.0
        %268 = vmatpush1.msra.mxu0 %v244
        %269 = vmatprep.subr.mxu0 0.0
        %270 = vmatpush1.msra.mxu0 %v243
        %271 = vmatprep.subr.mxu0 0.0
        %272 = vmatpush1.msra.mxu0 %v242
        %273 = vmatprep.subr.mxu0 0.0
        %274 = vmatpush1.msra.mxu0 %v241
        %275 = vmatprep.subr.mxu0 0.0
        %276 = vmatpush1.msra.mxu0 %v240
        %277 = vmatprep.subr.mxu0 0.0
        %278 = vmatpush1.msra.mxu0 %v239
        %279 = vmatprep.subr.mxu0 0.0
        %280 = vmatpush1.msra.mxu0 %v238
        %281 = vmatprep.subr.mxu0 0.0
        %282 = vmatpush1.msra.mxu0 %v237
        %283 = vmatprep.subr.mxu0 0.0
        %284 = vmatpush1.msra.mxu0 %v236
        %285 = vmatprep.subr.mxu0 0.0
        %286 = vmatpush1.msra.mxu0 %v235
        %287 = vmatprep.subr.mxu0 0.0
        %288 = vmatpush2.msra.mxu0 0.0
        %289 = vmatprep.subr.mxu0 0.0
        %290 = vmatpush2.msra.mxu0 0.0
        %291 = vmatprep.subr.mxu0 0.0
        %292 = vmatpush2.msra.mxu0 0.0
        %293 = vmatprep.subr.mxu0 0.0
        %294 = vmatpush2.msra.mxu0 0.0
        %295 = vmatprep.subr.mxu0 0.0
        %296 = vmatpush2.msra.mxu0 0.0
        %297 = vmatprep.subr.mxu0 0.0
        %298 = vmatpush2.msra.mxu0 0.0
        %299 = vmatprep.subr.mxu0 0.0
        %300 = vmatpush2.msra.mxu0 0.0
        %301 = vmatprep.subr.mxu0 0.0
        %302 = vmatpush2.msra.mxu0 0.0
        %303 = vmatprep.subr.mxu0 0.0
        %304 = vmatpush2.msra.mxu0 0.0
        %305 = vmatprep.subr.mxu0 0.0
        %306 = vmatpush2.msra.mxu0 0.0
        %307 = vmatprep.subr.mxu0 0.0
        %308 = vmatpush2.msra.mxu0 0.0
        %309 = vmatprep.subr.mxu0 0.0
        %310 = vmatpush2.msra.mxu0 0.0
        %311 = vmatprep.subr.mxu0 0.0
        %312 = vmatpush2.msra.mxu0 0.0
        %313 = vmatprep.subr.mxu0 0.0
        %314 = vmatpush2.msra.mxu0 0.0
        %315 = vmatprep.subr.mxu0 0.0
        %316 = vmatpush2.msra.mxu0 0.0
        %317 = vmatprep.subr.mxu0 0.0
        %318 = vmatpush2.msra.mxu0 0.0
        %319 = vmatprep.mubr.f32.mxu0 0.0
        %320 = vmatmul.mubr.f32.gmra.mxu0 %v218
        %v321 = vpop.f32.mrf.mxu0
        %v322 = vadd.f32 %v254, %v321
        %v323 = vpop.f32.mrf.mxu0
        %324 = vmatprep.mubr.f32.mxu0 0.0
        %325 = vmatmul.mubr.f32.gmra.mxu0 %v219
        %v326 = vpop.f32.mrf.mxu0
        %v327 = vadd.f32 %v254, %v326
        %v328 = vpop.f32.mrf.mxu0
        %329 = vmatprep.mubr.f32.mxu0 0.0
        %330 = vmatmul.mubr.f32.gmra.mxu0 %v220
        %v331 = vpop.f32.mrf.mxu0
        %v332 = vadd.f32 %v254, %v331
        %v333 = vpop.f32.mrf.mxu0
        %334 = vmatprep.mubr.f32.mxu0 0.0
        %335 = vmatmul.mubr.f32.gmra.mxu0 %v221
        %v336 = vpop.f32.mrf.mxu0
        %v337 = vadd.f32 %v254, %v336
        %v338 = vpop.f32.mrf.mxu0
        %339 = vmatprep.mubr.f32.mxu0 0.0
        %340 = vmatmul.mubr.f32.gmra.mxu0 %v222
        %v341 = vpop.f32.mrf.mxu0
        %v342 = vadd.f32 %v254, %v341
        %v343 = vpop.f32.mrf.mxu0
        %344 = vmatprep.mubr.f32.mxu0 0.0
        %345 = vmatmul.mubr.f32.gmra.mxu0 %v223
        %v346 = vpop.f32.mrf.mxu0
        %v347 = vadd.f32 %v254, %v346
        %v348 = vpop.f32.mrf.mxu0
        %349 = vmatprep.mubr.f32.mxu0 0.0
        %350 = vmatmul.mubr.f32.gmra.mxu0 %v224
        %v351 = vpop.f32.mrf.mxu0
        %v352 = vadd.f32 %v254, %v351
        %v353 = vpop.f32.mrf.mxu0
        %354 = vmatprep.mubr.f32.mxu0 0.0
        %355 = vmatmul.mubr.f32.gmra.mxu0 %v225
        %v356 = vpop.f32.mrf.mxu0
        %v357 = vadd.f32 %v254, %v356
        %v358 = vpop.f32.mrf.mxu0
        %359 = vmatprep.mubr.f32.mxu0 0.0
        %360 = vmatmul.mubr.f32.gmra.mxu0 %v226
        %v361 = vpop.f32.mrf.mxu0
        %v362 = vadd.f32 %v254, %v361
        %v363 = vpop.f32.mrf.mxu0
        %364 = vmatprep.mubr.f32.mxu0 0.0
        %365 = vmatmul.mubr.f32.gmra.mxu0 %v227
        %v366 = vpop.f32.mrf.mxu0
        %v367 = vadd.f32 %v254, %v366
        %v368 = vpop.f32.mrf.mxu0
        %369 = vmatprep.mubr.f32.mxu0 0.0
        %370 = vmatmul.mubr.f32.gmra.mxu0 %v228
        %v371 = vpop.f32.mrf.mxu0
        %v372 = vadd.f32 %v254, %v371
        %v373 = vpop.f32.mrf.mxu0
        %374 = vmatprep.mubr.f32.mxu0 0.0
        %375 = vmatmul.mubr.f32.gmra.mxu0 %v229
        %v376 = vpop.f32.mrf.mxu0
        %v377 = vadd.f32 %v254, %v376
        %v378 = vpop.f32.mrf.mxu0
        %379 = vmatprep.mubr.f32.mxu0 0.0
        %380 = vmatmul.mubr.f32.gmra.mxu0 %v230
        %v381 = vpop.f32.mrf.mxu0
        %v382 = vadd.f32 %v254, %v381
        %v383 = vpop.f32.mrf.mxu0
        %384 = vmatprep.mubr.f32.mxu0 0.0
        %385 = vmatmul.mubr.f32.gmra.mxu0 %v231
        %v386 = vpop.f32.mrf.mxu0
        %v387 = vadd.f32 %v254, %v386
        %v388 = vpop.f32.mrf.mxu0
        %389 = vmatprep.mubr.f32.mxu0 0.0
        %390 = vmatmul.mubr.f32.gmra.mxu0 %v232
        %v391 = vpop.f32.mrf.mxu0
        %v392 = vadd.f32 %v254, %v391
        %v393 = vpop.f32.mrf.mxu0
        %394 = vmatprep.mubr.f32.mxu0 0.0
        %395 = vmatmul.mubr.f32.gmra.mxu0 %v233
        %v396 = vpop.f32.mrf.mxu0
        %v397 = vadd.f32 %v254, %v396
        %v398 = vpop.f32.mrf.mxu0
        %399 = vdwg.mxu0
        %v400 = vmax.f32 %v322, 0.0
        %v401 = vmax.f32 %v327, 0.0
        %v402 = vmax.f32 %v332, 0.0
        %v403 = vmax.f32 %v337, 0.0
        %v404 = vmax.f32 %v342, 0.0
        %v405 = vmax.f32 %v347, 0.0
        %v406 = vmax.f32 %v352, 0.0
        %v407 = vmax.f32 %v357, 0.0
        %v408 = vmax.f32 %v362, 0.0
        %v409 = vmax.f32 %v367, 0.0
        %v410 = vmax.f32 %v372, 0.0
        %v411 = vmax.f32 %v377, 0.0
        %v412 = vmax.f32 %v382, 0.0
        %v413 = vmax.f32 %v387, 0.0
        %v414 = vmax.f32 %v392, 0.0
        %v415 = vmax.f32 %v397, 0.0
        %s416 = scalar_lea.vmem [#allocation5], 128
        %v417 = vld [vmem:[%s416] sm:$0xff]
        %v418 = vld [vmem:[%s416 + $0x8] sm:$0xff]
        %v419 = vld [vmem:[%s416 + $0x10] sm:$0xff]
        %v420 = vld [vmem:[%s416 + $0x18] sm:$0xff]
        %v421 = vld [vmem:[%s416 + $0x20] sm:$0xff]
        %v422 = vld [vmem:[%s416 + $0x28] sm:$0xff]
        %v423 = vld [vmem:[%s416 + $0x30] sm:$0xff]
        %v424 = vld [vmem:[%s416 + $0x38] sm:$0xff]
        %v425 = vld [vmem:[%s416 + $0x40] sm:$0xff]
        %v426 = vld [vmem:[%s416 + $0x48] sm:$0xff]
        %v427 = vld [vmem:[%s416 + $0x50] sm:$0xff]
        %v428 = vld [vmem:[%s416 + $0x58] sm:$0xff]
        %v429 = vld [vmem:[%s416 + $0x60] sm:$0xff]
        %v430 = vld [vmem:[%s416 + $0x68] sm:$0xff]
        %v431 = vld [vmem:[%s416 + $0x70] sm:$0xff]
        %v432 = vld [vmem:[%s416 + $0x78] sm:$0xff]
        %v433 = vlaneseq
        %v434 = vshrl.u32 %v433, 7
        %v435 = vsub.s32 1, %v434
        %v436 = vrot.slane %v234, %v435
        %437 = vmatprep.subr.mxu0 0.0
        %438 = vmatpush1.msra.mxu0 %v432
        %439 = vmatprep.subr.mxu0 0.0
        %440 = vmatpush1.msra.mxu0 %v431
        %441 = vmatprep.subr.mxu0 0.0
        %442 = vmatpush1.msra.mxu0 %v430
        %443 = vmatprep.subr.mxu0 0.0
        %444 = vmatpush1.msra.mxu0 %v429
        %445 = vmatprep.subr.mxu0 0.0
        %446 = vmatpush1.msra.mxu0 %v428
        %447 = vmatprep.subr.mxu0 0.0
        %448 = vmatpush1.msra.mxu0 %v427
        %449 = vmatprep.subr.mxu0 0.0
        %450 = vmatpush1.msra.mxu0 %v426
        %451 = vmatprep.subr.mxu0 0.0
        %452 = vmatpush1.msra.mxu0 %v425
        %453 = vmatprep.subr.mxu0 0.0
        %454 = vmatpush1.msra.mxu0 %v424
        %455 = vmatprep.subr.mxu0 0.0
        %456 = vmatpush1.msra.mxu0 %v423
        %457 = vmatprep.subr.mxu0 0.0
        %458 = vmatpush1.msra.mxu0 %v422
        %459 = vmatprep.subr.mxu0 0.0
        %460 = vmatpush1.msra.mxu0 %v421
        %461 = vmatprep.subr.mxu0 0.0
        %462 = vmatpush1.msra.mxu0 %v420
        %463 = vmatprep.subr.mxu0 0.0
        %464 = vmatpush1.msra.mxu0 %v419
        %465 = vmatprep.subr.mxu0 0.0
        %466 = vmatpush1.msra.mxu0 %v418
        %467 = vmatprep.subr.mxu0 0.0
        %468 = vmatpush1.msra.mxu0 %v417
        %469 = vmatprep.subr.mxu0 0.0
        %470 = vmatpush2.msra.mxu0 0.0
        %471 = vmatprep.subr.mxu0 0.0
        %472 = vmatpush2.msra.mxu0 0.0
        %473 = vmatprep.subr.mxu0 0.0
        %474 = vmatpush2.msra.mxu0 0.0
        %475 = vmatprep.subr.mxu0 0.0
        %476 = vmatpush2.msra.mxu0 0.0
        %477 = vmatprep.subr.mxu0 0.0
        %478 = vmatpush2.msra.mxu0 0.0
        %479 = vmatprep.subr.mxu0 0.0
        %480 = vmatpush2.msra.mxu0 0.0
        %481 = vmatprep.subr.mxu0 0.0
        %482 = vmatpush2.msra.mxu0 0.0
        %483 = vmatprep.subr.mxu0 0.0
        %484 = vmatpush2.msra.mxu0 0.0
        %485 = vmatprep.subr.mxu0 0.0
        %486 = vmatpush2.msra.mxu0 0.0
        %487 = vmatprep.subr.mxu0 0.0
        %488 = vmatpush2.msra.mxu0 0.0
        %489 = vmatprep.subr.mxu0 0.0
        %490 = vmatpush2.msra.mxu0 0.0
        %491 = vmatprep.subr.mxu0 0.0
        %492 = vmatpush2.msra.mxu0 0.0
        %493 = vmatprep.subr.mxu0 0.0
        %494 = vmatpush2.msra.mxu0 0.0
        %495 = vmatprep.subr.mxu0 0.0
        %496 = vmatpush2.msra.mxu0 0.0
        %497 = vmatprep.subr.mxu0 0.0
        %498 = vmatpush2.msra.mxu0 0.0
        %499 = vmatprep.subr.mxu0 0.0
        %500 = vmatpush2.msra.mxu0 0.0
        %501 = vmatprep.mubr.f32.mxu0 0.0
        %502 = vmatmul.mubr.f32.gmra.mxu0 %v400
        %v503 = vpop.f32.mrf.mxu0
        %v504 = vadd.f32 %v436, %v503
        %v505 = vpop.f32.mrf.mxu0
        %506 = vmatprep.mubr.f32.mxu0 0.0
        %507 = vmatmul.mubr.f32.gmra.mxu0 %v401
        %v508 = vpop.f32.mrf.mxu0
        %v509 = vadd.f32 %v436, %v508
        %v510 = vpop.f32.mrf.mxu0
        %511 = vmatprep.mubr.f32.mxu0 0.0
        %512 = vmatmul.mubr.f32.gmra.mxu0 %v402
        %v513 = vpop.f32.mrf.mxu0
        %v514 = vadd.f32 %v436, %v513
        %v515 = vpop.f32.mrf.mxu0
        %516 = vmatprep.mubr.f32.mxu0 0.0
        %517 = vmatmul.mubr.f32.gmra.mxu0 %v403
        %v518 = vpop.f32.mrf.mxu0
        %v519 = vadd.f32 %v436, %v518
        %v520 = vpop.f32.mrf.mxu0
        %521 = vmatprep.mubr.f32.mxu0 0.0
        %522 = vmatmul.mubr.f32.gmra.mxu0 %v404
        %v523 = vpop.f32.mrf.mxu0
        %v524 = vadd.f32 %v436, %v523
        %v525 = vpop.f32.mrf.mxu0
        %526 = vmatprep.mubr.f32.mxu0 0.0
        %527 = vmatmul.mubr.f32.gmra.mxu0 %v405
        %v528 = vpop.f32.mrf.mxu0
        %v529 = vadd.f32 %v436, %v528
        %v530 = vpop.f32.mrf.mxu0
        %531 = vmatprep.mubr.f32.mxu0 0.0
        %532 = vmatmul.mubr.f32.gmra.mxu0 %v406
        %v533 = vpop.f32.mrf.mxu0
        %v534 = vadd.f32 %v436, %v533
        %v535 = vpop.f32.mrf.mxu0
        %536 = vmatprep.mubr.f32.mxu0 0.0
        %537 = vmatmul.mubr.f32.gmra.mxu0 %v407
        %v538 = vpop.f32.mrf.mxu0
        %v539 = vadd.f32 %v436, %v538
        %v540 = vpop.f32.mrf.mxu0
        %541 = vmatprep.mubr.f32.mxu0 0.0
        %542 = vmatmul.mubr.f32.gmra.mxu0 %v408
        %v543 = vpop.f32.mrf.mxu0
        %v544 = vadd.f32 %v436, %v543
        %v545 = vpop.f32.mrf.mxu0
        %546 = vmatprep.mubr.f32.mxu0 0.0
        %547 = vmatmul.mubr.f32.gmra.mxu0 %v409
        %v548 = vpop.f32.mrf.mxu0
        %v549 = vadd.f32 %v436, %v548
        %v550 = vpop.f32.mrf.mxu0
        %551 = vmatprep.mubr.f32.mxu0 0.0
        %552 = vmatmul.mubr.f32.gmra.mxu0 %v410
        %v553 = vpop.f32.mrf.mxu0
        %v554 = vadd.f32 %v436, %v553
        %v555 = vpop.f32.mrf.mxu0
        %556 = vmatprep.mubr.f32.mxu0 0.0
        %557 = vmatmul.mubr.f32.gmra.mxu0 %v411
        %v558 = vpop.f32.mrf.mxu0
        %v559 = vadd.f32 %v436, %v558
        %v560 = vpop.f32.mrf.mxu0
        %561 = vmatprep.mubr.f32.mxu0 0.0
        %562 = vmatmul.mubr.f32.gmra.mxu0 %v412
        %v563 = vpop.f32.mrf.mxu0
        %v564 = vadd.f32 %v436, %v563
        %v565 = vpop.f32.mrf.mxu0
        %566 = vmatprep.mubr.f32.mxu0 0.0
        %567 = vmatmul.mubr.f32.gmra.mxu0 %v413
        %v568 = vpop.f32.mrf.mxu0
        %v569 = vadd.f32 %v436, %v568
        %v570 = vpop.f32.mrf.mxu0
        %571 = vmatprep.mubr.f32.mxu0 0.0
        %572 = vmatmul.mubr.f32.gmra.mxu0 %v414
        %v573 = vpop.f32.mrf.mxu0
        %v574 = vadd.f32 %v436, %v573
        %v575 = vpop.f32.mrf.mxu0
        %576 = vmatprep.mubr.f32.mxu0 0.0
        %577 = vmatmul.mubr.f32.gmra.mxu0 %v415
        %v578 = vpop.f32.mrf.mxu0
        %v579 = vadd.f32 %v436, %v578
        %v580 = vpop.f32.mrf.mxu0
        %581 = vdwg.mxu0
        %v582 = vmax.f32 %v504, 0.0
        %v583 = vmax.f32 %v509, 0.0
        %v584 = vmax.f32 %v514, 0.0
        %v585 = vmax.f32 %v519, 0.0
        %v586 = vmax.f32 %v524, 0.0
        %v587 = vmax.f32 %v529, 0.0
        %v588 = vmax.f32 %v534, 0.0
        %v589 = vmax.f32 %v539, 0.0
        %v590 = vmax.f32 %v544, 0.0
        %v591 = vmax.f32 %v549, 0.0
        %v592 = vmax.f32 %v554, 0.0
        %v593 = vmax.f32 %v559, 0.0
        %v594 = vmax.f32 %v564, 0.0
        %v595 = vmax.f32 %v569, 0.0
        %v596 = vmax.f32 %v574, 0.0
        %v597 = vmax.f32 %v579, 0.0
        %s598 = scalar_lea.vmem [#allocation5], 256
        %v599 = vld [vmem:[%s598] sm:$0xff]
        %v600 = vld [vmem:[%s598 + $0x8] sm:$0xff]
        %v601 = vld [vmem:[%s598 + $0x10] sm:$0xff]
        %v602 = vld [vmem:[%s598 + $0x18] sm:$0xff]
        %v603 = vld [vmem:[%s598 + $0x20] sm:$0xff]
        %v604 = vld [vmem:[%s598 + $0x28] sm:$0xff]
        %v605 = vld [vmem:[%s598 + $0x30] sm:$0xff]
        %v606 = vld [vmem:[%s598 + $0x38] sm:$0xff]
        %v607 = vld [vmem:[%s598 + $0x40] sm:$0xff]
        %v608 = vld [vmem:[%s598 + $0x48] sm:$0xff]
        %v609 = vld [vmem:[%s598 + $0x50] sm:$0xff]
        %v610 = vld [vmem:[%s598 + $0x58] sm:$0xff]
        %v611 = vld [vmem:[%s598 + $0x60] sm:$0xff]
        %v612 = vld [vmem:[%s598 + $0x68] sm:$0xff]
        %v613 = vld [vmem:[%s598 + $0x70] sm:$0xff]
        %v614 = vld [vmem:[%s598 + $0x78] sm:$0xff]
        %v615 = vlaneseq
        %v616 = vshrl.u32 %v615, 7
        %v617 = vsub.s32 2, %v616
        %v618 = vrot.slane %v234, %v617
        %619 = vmatprep.subr.mxu0 0.0
        %620 = vmatpush1.msra.mxu0 %v614
        %621 = vmatprep.subr.mxu0 0.0
        %622 = vmatpush1.msra.mxu0 %v613
        %623 = vmatprep.subr.mxu0 0.0
        %624 = vmatpush1.msra.mxu0 %v612
        %625 = vmatprep.subr.mxu0 0.0
        %626 = vmatpush1.msra.mxu0 %v611
        %627 = vmatprep.subr.mxu0 0.0
        %628 = vmatpush1.msra.mxu0 %v610
        %629 = vmatprep.subr.mxu0 0.0
        %630 = vmatpush1.msra.mxu0 %v609
        %631 = vmatprep.subr.mxu0 0.0
        %632 = vmatpush1.msra.mxu0 %v608
        %633 = vmatprep.subr.mxu0 0.0
        %634 = vmatpush1.msra.mxu0 %v607
        %635 = vmatprep.subr.mxu0 0.0
        %636 = vmatpush1.msra.mxu0 %v606
        %637 = vmatprep.subr.mxu0 0.0
        %638 = vmatpush1.msra.mxu0 %v605
        %639 = vmatprep.subr.mxu0 0.0
        %640 = vmatpush1.msra.mxu0 %v604
        %641 = vmatprep.subr.mxu0 0.0
        %642 = vmatpush1.msra.mxu0 %v603
        %643 = vmatprep.subr.mxu0 0.0
        %644 = vmatpush1.msra.mxu0 %v602
        %645 = vmatprep.subr.mxu0 0.0
        %646 = vmatpush1.msra.mxu0 %v601
        %647 = vmatprep.subr.mxu0 0.0
        %648 = vmatpush1.msra.mxu0 %v600
        %649 = vmatprep.subr.mxu0 0.0
        %650 = vmatpush1.msra.mxu0 %v599
        %651 = vmatprep.subr.mxu0 0.0
        %652 = vmatpush2.msra.mxu0 0.0
        %653 = vmatprep.subr.mxu0 0.0
        %654 = vmatpush2.msra.mxu0 0.0
        %655 = vmatprep.subr.mxu0 0.0
        %656 = vmatpush2.msra.mxu0 0.0
        %657 = vmatprep.subr.mxu0 0.0
        %658 = vmatpush2.msra.mxu0 0.0
        %659 = vmatprep.subr.mxu0 0.0
        %660 = vmatpush2.msra.mxu0 0.0
        %661 = vmatprep.subr.mxu0 0.0
        %662 = vmatpush2.msra.mxu0 0.0
        %663 = vmatprep.subr.mxu0 0.0
        %664 = vmatpush2.msra.mxu0 0.0
        %665 = vmatprep.subr.mxu0 0.0
        %666 = vmatpush2.msra.mxu0 0.0
        %667 = vmatprep.subr.mxu0 0.0
        %668 = vmatpush2.msra.mxu0 0.0
        %669 = vmatprep.subr.mxu0 0.0
        %670 = vmatpush2.msra.mxu0 0.0
        %671 = vmatprep.subr.mxu0 0.0
        %672 = vmatpush2.msra.mxu0 0.0
        %673 = vmatprep.subr.mxu0 0.0
        %674 = vmatpush2.msra.mxu0 0.0
        %675 = vmatprep.subr.mxu0 0.0
        %676 = vmatpush2.msra.mxu0 0.0
        %677 = vmatprep.subr.mxu0 0.0
        %678 = vmatpush2.msra.mxu0 0.0
        %679 = vmatprep.subr.mxu0 0.0
        %680 = vmatpush2.msra.mxu0 0.0
        %681 = vmatprep.subr.mxu0 0.0
        %682 = vmatpush2.msra.mxu0 0.0
        %683 = vmatprep.mubr.f32.mxu0 0.0
        %684 = vmatmul.mubr.f32.gmra.mxu0 %v582
        %v685 = vpop.f32.mrf.mxu0
        %v686 = vadd.f32 %v618, %v685
        %v687 = vpop.f32.mrf.mxu0
        %688 = vmatprep.mubr.f32.mxu0 0.0
        %689 = vmatmul.mubr.f32.gmra.mxu0 %v583
        %v690 = vpop.f32.mrf.mxu0
        %v691 = vadd.f32 %v618, %v690
        %v692 = vpop.f32.mrf.mxu0
        %693 = vmatprep.mubr.f32.mxu0 0.0
        %694 = vmatmul.mubr.f32.gmra.mxu0 %v584
        %v695 = vpop.f32.mrf.mxu0
        %v696 = vadd.f32 %v618, %v695
        %v697 = vpop.f32.mrf.mxu0
        %698 = vmatprep.mubr.f32.mxu0 0.0
        %699 = vmatmul.mubr.f32.gmra.mxu0 %v585
        %v700 = vpop.f32.mrf.mxu0
        %v701 = vadd.f32 %v618, %v700
        %v702 = vpop.f32.mrf.mxu0
        %703 = vmatprep.mubr.f32.mxu0 0.0
        %704 = vmatmul.mubr.f32.gmra.mxu0 %v586
        %v705 = vpop.f32.mrf.mxu0
        %v706 = vadd.f32 %v618, %v705
        %v707 = vpop.f32.mrf.mxu0
        %708 = vmatprep.mubr.f32.mxu0 0.0
        %709 = vmatmul.mubr.f32.gmra.mxu0 %v587
        %v710 = vpop.f32.mrf.mxu0
        %v711 = vadd.f32 %v618, %v710
        %v712 = vpop.f32.mrf.mxu0
        %713 = vmatprep.mubr.f32.mxu0 0.0
        %714 = vmatmul.mubr.f32.gmra.mxu0 %v588
        %v715 = vpop.f32.mrf.mxu0
        %v716 = vadd.f32 %v618, %v715
        %v717 = vpop.f32.mrf.mxu0
        %718 = vmatprep.mubr.f32.mxu0 0.0
        %719 = vmatmul.mubr.f32.gmra.mxu0 %v589
        %v720 = vpop.f32.mrf.mxu0
        %v721 = vadd.f32 %v618, %v720
        %v722 = vpop.f32.mrf.mxu0
        %723 = vmatprep.mubr.f32.mxu0 0.0
        %724 = vmatmul.mubr.f32.gmra.mxu0 %v590
        %v725 = vpop.f32.mrf.mxu0
        %v726 = vadd.f32 %v618, %v725
        %v727 = vpop.f32.mrf.mxu0
        %728 = vmatprep.mubr.f32.mxu0 0.0
        %729 = vmatmul.mubr.f32.gmra.mxu0 %v591
        %v730 = vpop.f32.mrf.mxu0
        %v731 = vadd.f32 %v618, %v730
        %v732 = vpop.f32.mrf.mxu0
        %733 = vmatprep.mubr.f32.mxu0 0.0
        %734 = vmatmul.mubr.f32.gmra.mxu0 %v592
        %v735 = vpop.f32.mrf.mxu0
        %v736 = vadd.f32 %v618, %v735
        %v737 = vpop.f32.mrf.mxu0
        %738 = vmatprep.mubr.f32.mxu0 0.0
        %739 = vmatmul.mubr.f32.gmra.mxu0 %v593
        %v740 = vpop.f32.mrf.mxu0
        %v741 = vadd.f32 %v618, %v740
        %v742 = vpop.f32.mrf.mxu0
        %743 = vmatprep.mubr.f32.mxu0 0.0
        %744 = vmatmul.mubr.f32.gmra.mxu0 %v594
        %v745 = vpop.f32.mrf.mxu0
        %v746 = vadd.f32 %v618, %v745
        %v747 = vpop.f32.mrf.mxu0
        %748 = vmatprep.mubr.f32.mxu0 0.0
        %749 = vmatmul.mubr.f32.gmra.mxu0 %v595
        %v750 = vpop.f32.mrf.mxu0
        %v751 = vadd.f32 %v618, %v750
        %v752 = vpop.f32.mrf.mxu0
        %753 = vmatprep.mubr.f32.mxu0 0.0
        %754 = vmatmul.mubr.f32.gmra.mxu0 %v596
        %v755 = vpop.f32.mrf.mxu0
        %v756 = vadd.f32 %v618, %v755
        %v757 = vpop.f32.mrf.mxu0
        %758 = vmatprep.mubr.f32.mxu0 0.0
        %759 = vmatmul.mubr.f32.gmra.mxu0 %v597
        %v760 = vpop.f32.mrf.mxu0
        %v761 = vadd.f32 %v618, %v760
        %v762 = vpop.f32.mrf.mxu0
        %763 = vdwg.mxu0
        %v764 = vadd.f32 %v686, %v218
        %v765 = vadd.f32 %v691, %v219
        %v766 = vadd.f32 %v696, %v220
        %v767 = vadd.f32 %v701, %v221
        %v768 = vadd.f32 %v706, %v222
        %v769 = vadd.f32 %v711, %v223
        %v770 = vadd.f32 %v716, %v224
        %v771 = vadd.f32 %v721, %v225
        %v772 = vadd.f32 %v726, %v226
        %v773 = vadd.f32 %v731, %v227
        %v774 = vadd.f32 %v736, %v228
        %v775 = vadd.f32 %v741, %v229
        %v776 = vadd.f32 %v746, %v230
        %v777 = vadd.f32 %v751, %v231
        %v778 = vadd.f32 %v756, %v232
        %v779 = vadd.f32 %v761, %v233
        %v780 = vmax.f32 %v764, 0.0
        %v781 = vmax.f32 %v765, 0.0
        %v782 = vmax.f32 %v766, 0.0
        %v783 = vmax.f32 %v767, 0.0
        %v784 = vmax.f32 %v768, 0.0
        %v785 = vmax.f32 %v769, 0.0
        %v786 = vmax.f32 %v770, 0.0
        %v787 = vmax.f32 %v771, 0.0
        %v788 = vmax.f32 %v772, 0.0
        %v789 = vmax.f32 %v773, 0.0
        %v790 = vmax.f32 %v774, 0.0
        %v791 = vmax.f32 %v775, 0.0
        %v792 = vmax.f32 %v776, 0.0
        %v793 = vmax.f32 %v777, 0.0
        %v794 = vmax.f32 %v778, 0.0
        %v795 = vmax.f32 %v779, 0.0
        %796 = vst [vmem:[%s215] sm:$0xff] %v780
        %797 = vst [vmem:[%s215 + $0x8] sm:$0xff] %v781
        %798 = vst [vmem:[%s215 + $0x10] sm:$0xff] %v782
        %799 = vst [vmem:[%s215 + $0x18] sm:$0xff] %v783
        %800 = vst [vmem:[%s215 + $0x20] sm:$0xff] %v784
        %801 = vst [vmem:[%s215 + $0x28] sm:$0xff] %v785
        %802 = vst [vmem:[%s215 + $0x30] sm:$0xff] %v786
        %803 = vst [vmem:[%s215 + $0x38] sm:$0xff] %v787
        %804 = vst [vmem:[%s215 + $0x40] sm:$0xff] %v788
        %805 = vst [vmem:[%s215 + $0x48] sm:$0xff] %v789
        %806 = vst [vmem:[%s215 + $0x50] sm:$0xff] %v790
        %807 = vst [vmem:[%s215 + $0x58] sm:$0xff] %v791
        %808 = vst [vmem:[%s215 + $0x60] sm:$0xff] %v792
        %809 = vst [vmem:[%s215 + $0x68] sm:$0xff] %v793
        %810 = vst [vmem:[%s215 + $0x70] sm:$0xff] %v794
        %811 = vst [vmem:[%s215 + $0x78] sm:$0xff] %v795
        %s812 = sand.u32 %s97, 1
        %s813 = scalar_lea.sflag [#allocation4], %s812
        %s814 = sand.u32 %s97, 1
        %s815 = smul.addr %s814, 128
        %s816 = scalar_lea.vmem [#allocation8], %s815
        // Predicated region
        $region45: #{tpu_custom_call.1} parent=31 // pred_check
          %p817 = pneg %p107
        $region46: #{tpu_custom_call.1} parent=31 // pred_check_branch
          %819 = sbr.rel (%p817) target = $region48
        $region47: #{tpu_custom_call.1} parent=31 // pred_region
          %s820 = smul.u32 16, %s21
          %s822 = ssub.s32 2048, 2048
          %823 = vsyncadd %s813, %s822
          %s824 = smul.addr %s820, 128
          %s825 = scalar_lea.hbm %s3, %s824
          %s826 = sshll.u32 %s816, 4
          %s827 = int_to_ptr.vmem [resolvable:$true] %s826
          %832 = dma.vmem_to_hbm [thread:$0]  %s827, 2048, %s825, %s813, 128, 128, 8
        $region48: #{tpu_custom_call.1} parent=31 // pred_fallthru
          _
      $region32: #{tpu_custom_call.1} parent=5 // pred_fallthru
        _
      %p833 = scmp.le.s32.totalorder 2, %s16
      // Predicated region
      $region49: #{tpu_custom_call.1} parent=5 // pred_check
        %p834 = pneg %p833
      $region50: #{tpu_custom_call.1} parent=5 // pred_check_branch
        %836 = sbr.rel (%p834) target = $region52
      $region51: #{tpu_custom_call.1} parent=5 // pred_region
        %s837 = ssub.s32 %s16, 2
        // Predicated region
        $region53: #{tpu_custom_call.1} parent=51 // pred_check
          %p838 = pneg %p113
        $region54: #{tpu_custom_call.1} parent=51 // pred_check_branch
          %840 = sbr.rel (%p838) target = $region56
        $region55: #{tpu_custom_call.1} parent=51 // pred_region
          %s841 = sand.u32 %s98, 1
          %s842 = scalar_lea.sflag [#allocation4], %s841
          %s843 = sand.u32 %s98, 1
          %s844 = smul.addr %s843, 128
          %s845 = scalar_lea.vmem [#allocation8], %s844
          %846 = dma.done %s842, 2048
        $region56: #{tpu_custom_call.1} parent=51 // pred_fallthru
          _
      $region52: #{tpu_custom_call.1} parent=5 // pred_fallthru
        _
    $region6: #{tpu_custom_call.1} parent=1 // loop_footer
      %s20 = sadd.s32 1, %s16
    $region7: #{tpu_custom_call.1} parent=1 // loop_footer_branch
      %15 = sbr.rel target = $region3
    $region8: #{tpu_custom_call.1} parent=1 // loop_exit
      _
    %847 = vsyncpa [#allocation3], 1
    %s848 = scalar_lea.sflag [#allocation3], 1
    %849 = vsyncpa %s848, 1
    %850 = vsyncpa [#allocation6], 1
    %851 = vsyncpa [#allocation4], 1
    %s852 = scalar_lea.sflag [#allocation4], 1
    %853 = vsyncpa %s852, 1

</llo_original>
